<compile_context>
chip_gen: v5e
topology: v5e:2x2
jax: 0.10.0
libtpu: 0.0.40
codegen_flags: <defaults>
</compile_context>

<pallas_src>
import jax
import jax.numpy as jnp
from jax.experimental import pallas as pl
from jax.experimental.pallas import tpu as pltpu


LEAKY_SLOPE = 0.01       # PyTorch nn.LeakyReLU default
NEG_BIAS = -1e9          # HAN "no-edge" bias value


def _round_up(x, m):
    return ((x + m - 1) // m) * m


def _pick_tile(total, cap):
    """Largest multiple of 128 that divides `total` (a multiple of 128) and <= cap."""
    cap = max(128, min(cap, total))
    t = (cap // 128) * 128
    while total % t:
        t -= 128
    return t


def _leaky_relu(x, slope=LEAKY_SLOPE):
    return jnp.where(x > 0, x, slope * x)


def _elu(x):
    return jnp.where(x > 0, x, jnp.expm1(x))


# -----------------------------------------------------------------------------
# Attention tiling + precomputed (hoisted) adjacency masks and per-tile flags.
# -----------------------------------------------------------------------------
def attention_tiling(N, q_tile=512, k_tile=2048):
    base = _round_up(N, 128)
    tk = min((k_tile // 128) * 128, base)
    tq = min((q_tile // 128) * 128, tk)
    if tk % tq:
        tq = tk
    n_pad = _round_up(N, tk)          # divisible by both tk and tq
    return tq, tk, n_pad


def prepare_attention_masks(bias_mat_list, *, q_tile=512, k_tile=2048):
    """Precompute (once, outside the forward path) the int8 transposed adjacency
    masks and the per-(q,k)-tile nonzero flags used by the flash GAT kernel.

    NOTE: assumes bias_mat entries are {0, -1e9} (edge / no-edge), as produced by
    the standard HAN adj_to_bias preprocessing; arbitrary finite additive biases
    are not representable as a 0/1 mask."""
    N = bias_mat_list[0].shape[0]
    tq, tk, n_pad = attention_tiling(N, q_tile, k_tile)
    nq, nk = n_pad // tq, n_pad // tk
    masks_t, flags = [], []
    for bm in bias_mat_list:
        m = (bm > -1e8).astype(jnp.int8)                               # 1 = edge
        mt = jnp.pad(jnp.transpose(m), ((0, n_pad - N), (0, n_pad - N)))  # [k, q]
        masks_t.append(mt)
        blk = mt.reshape(nk, tk, nq, tq).astype(jnp.int32)
        f = jnp.sum(blk, axis=(1, 3)) > 0                               # [nk, nq]
        flags.append(jnp.transpose(f))                                  # [nq, nk]
    return dict(
        mask_t=jnp.stack(masks_t),                                      # [P, n_pad, n_pad]
        flags=jnp.stack(flags).astype(jnp.int32).reshape(-1),           # [P*nq*nk]
        tq=tq, tk=tk, n_pad=n_pad)


# -----------------------------------------------------------------------------
# Kernel 1: per-metapath projection (Conv1d k=1) + attention logit vectors.
# -----------------------------------------------------------------------------
def _proj_kernel(x_ref, w1_ref, b1_ref, a1_ref, bf1_ref, a2_ref, bf2_ref,
                 sf_ref, f1_ref, f2_ref):
    # x_ref: [F, TN]   w1: [H, F]   b1: [H, 1]   a1/a2: [H, 1]   bf1/bf2: [1, 1]
    sf = jnp.dot(w1_ref[...], x_ref[...],
                 preferred_element_type=jnp.float32) + b1_ref[...]          # [H, TN]
    sf_ref[...] = sf
    # 1-row "matvecs" done as VPU broadcast-mul + sublane reduce (off the MXU).
    f1_ref[...] = jnp.sum(sf * a1_ref[...], axis=0, keepdims=True) + bf1_ref[...]
    f2_ref[...] = jnp.sum(sf * a2_ref[...], axis=0, keepdims=True) + bf2_ref[...]


def _proj_tile(n_pad, F):
    # Keep the double-buffered x block (F x tile f32) around <= ~8 MiB; for small
    # F this means one (or very few) fat grid steps instead of many tiny ones.
    cap = (8 << 20) // (2 * 4 * max(F, 1))
    cap = min(8192, max(128, (cap // 128) * 128))
    return _pick_tile(n_pad, cap)


def attn_head_projection(x_fn, w1, b1, a1col, bf1, a2col, bf2, *, tile):
    F, n_pad = x_fn.shape
    H = w1.shape[0]
    full = lambda shape: pl.BlockSpec(shape, lambda i: (0, 0))
    return pl.pallas_call(
        _proj_kernel,
        grid=(n_pad // tile,),
        in_specs=[
            pl.BlockSpec((F, tile), lambda i: (0, i)),
            full((H, F)), full((H, 1)), full((H, 1)), full((1, 1)),
            full((H, 1)), full((1, 1)),
        ],
        out_specs=[
            pl.BlockSpec((H, tile), lambda i: (0, i)),
            pl.BlockSpec((1, tile), lambda i: (0, i)),
            pl.BlockSpec((1, tile), lambda i: (0, i)),
        ],
        out_shape=[
            jax.ShapeDtypeStruct((H, n_pad), jnp.float32),
            jax.ShapeDtypeStruct((1, n_pad), jnp.float32),
            jax.ShapeDtypeStruct((1, n_pad), jnp.float32),
        ],
        compiler_params=pltpu.CompilerParams(
            dimension_semantics=("parallel",)),
    )(x_fn, w1, b1, a1col, bf1, a2col, bf2)


# -----------------------------------------------------------------------------
# Kernel 2: masked GAT attention, flash-style online softmax, all metapaths in
# one pallas_call.  Channels-first / lane-dense everywhere; the [N, N]
# coefficient matrix is never materialized; fully-masked tiles are skipped.
# -----------------------------------------------------------------------------
def _flash_gat_kernel(flags_ref, sf_ref, f1_ref, f2_ref, mask_ref, o_ref,
                      m_sc, l_sc, acc_sc):
    # sf_ref:   [H, TK]    value block (seq_fts, channels-first)
    # f1_ref:   [TK, 1]    neighbor logit term (column -> broadcasts over lanes)
    # f2_ref:   [1, TQ]    query logit term (lane-major row)
    # mask_ref: [TK, TQ]   int8 TRANSPOSED adjacency (1 = edge q->k)
    # o_ref:    [H, TQ]    ELU(attention output), channels-first (lane-dense store)
    # m_sc/l_sc:[1, TQ]    running max / denominator      acc_sc: [H, TQ]
    p_i = pl.program_id(0)
    q_i = pl.program_id(1)
    k_i = pl.program_id(2)
    nq = pl.num_programs(1)
    nk = pl.num_programs(2)

    @pl.when(k_i == 0)
    def _():
        m_sc[...] = jnp.full_like(m_sc, -jnp.inf)
        l_sc[...] = jnp.zeros_like(l_sc)
        acc_sc[...] = jnp.zeros_like(acc_sc)

    # Block-sparse skip: scalar-prefetched per-(p,q,k)-tile edge flag.
    flag = flags_ref[(p_i * nq + q_i) * nk + k_i]

    @pl.when(flag != 0)
    def _():
        # s_t[k, q] = LeakyReLU(f2[q] + f1[k]); keep the finite -1e9 no-edge bias
        # (never -inf) so isolated / padded rows stay NaN-free.
        s = _leaky_relu(f2_ref[...] + f1_ref[...])                            # [TK, TQ]
        s = jnp.where(mask_ref[...] > 0, s, s + NEG_BIAS)

        m_new = jnp.maximum(m_sc[...], jnp.max(s, axis=0, keepdims=True))     # [1, TQ]
        alpha = jnp.exp(m_sc[...] - m_new)
        p = jnp.exp(s - m_new)                                                # [TK, TQ]
        l_sc[...] = alpha * l_sc[...] + jnp.sum(p, axis=0, keepdims=True)
        # PV update on the MXU with bf16 operands, f32 accumulation.
        acc_sc[...] = alpha * acc_sc[...] + jnp.dot(
            sf_ref[...].astype(jnp.bfloat16), p.astype(jnp.bfloat16),
            preferred_element_type=jnp.float32)                               # [H, TQ]
        m_sc[...] = m_new

    @pl.when(k_i == nk - 1)
    def _():
        # l == 0 only for rows whose every tile was skipped (pure padding rows);
        # guard so the (sliced-off) result stays finite.
        l = jnp.where(l_sc[...] > 0.0, l_sc[...], 1.0)
        o_ref[...] = _elu(acc_sc[...] * pl.reciprocal(l, approx=True)
                          ).astype(o_ref.dtype)


def flash_gat_heads(flags, sf_all, f1t_all, f2_all, mask_t_all, *, tq, tk):
    P, H, n_pad = sf_all.shape
    nq, nk = n_pad // tq, n_pad // tk
    # VMEM footprint per step (double-buffered): mask tk*tq int8, f1 column
    # (tk,1)->(tk,128) f32, sf H*tk f32, f2/out ~ H*tq f32  ->  a few MiB for
    # tq=512, tk=2048, well inside the default scoped VMEM on v5e/v6e/v7x.
    grid_spec = pltpu.PrefetchScalarGridSpec(
        num_scalar_prefetch=1,
        grid=(P, nq, nk),
        in_specs=[
            pl.BlockSpec((None, H, tk), lambda p, q, k, fl: (p, 0, k)),
            pl.BlockSpec((None, tk, 1), lambda p, q, k, fl: (p, k, 0)),
            pl.BlockSpec((None, 1, tq), lambda p, q, k, fl: (p, 0, q)),
            pl.BlockSpec((None, tk, tq), lambda p, q, k, fl: (p, k, q)),
        ],
        out_specs=pl.BlockSpec((None, H, tq), lambda p, q, k, fl: (p, 0, q)),
        scratch_shapes=[
            pltpu.VMEM((1, tq), jnp.float32),    # running max (lane-major)
            pltpu.VMEM((1, tq), jnp.float32),    # running denominator
            pltpu.VMEM((H, tq), jnp.float32),    # output accumulator (channels-first)
        ],
    )
    return pl.pallas_call(
        _flash_gat_kernel,
        grid_spec=grid_spec,
        out_shape=jax.ShapeDtypeStruct((P, H, n_pad), jnp.float32),
        compiler_params=pltpu.CompilerParams(
            dimension_semantics=("parallel", "parallel", "arbitrary")),
    )(flags, sf_all, f1t_all, f2_all, mask_t_all)


# -----------------------------------------------------------------------------
# Kernel 3: SimpleAttLayer (semantic attention over metapaths) + final Linear,
# tiled over node rows, fc output padded to a lane-dense 128 channels.
# -----------------------------------------------------------------------------
def _semantic_fc_kernel(x_ref, w_ref, b_ref, u_ref, wfc_ref, bfc_ref, o_ref):
    # x_ref: [P, TN, D]  w: [D, A]  b: [1, A]  u: [1, A]  wfc: [D, CP]  bfc: [1, CP]
    P, TN, D = x_ref.shape
    x = x_ref[...]
    # Single fused [P*TN, D] @ [D, A] matmul for all metapaths.
    v = jnp.tanh(jnp.dot(x.reshape(P * TN, D), w_ref[...],
                         preferred_element_type=jnp.float32) + b_ref[...])    # [P*TN, A]
    vu_flat = jnp.sum(v * u_ref[...], axis=-1, keepdims=True)                  # [P*TN, 1]
    vu = jnp.concatenate(
        [vu_flat[pi * TN:(pi + 1) * TN] for pi in range(P)], axis=-1)          # [TN, P]

    # softmax over the metapath axis (packed, lane-resident).
    m = jnp.max(vu, axis=-1, keepdims=True)
    e = jnp.exp(vu - m)
    alphas = e / jnp.sum(e, axis=-1, keepdims=True)                             # [TN, P]

    final = jnp.zeros((TN, D), jnp.float32)
    for pi in range(P):
        final = final + alphas[:, pi:pi + 1] * x[pi]                            # [TN, D]

    o_ref[...] = jnp.dot(final, wfc_ref[...],
                         preferred_element_type=jnp.float32) + bfc_ref[...]


def semantic_att_fc(x_pnd, w_omega, b_omega, u_row, wfc_pad, bfc_pad, *, tile):
    P, n_pad, D = x_pnd.shape
    A = w_omega.shape[1]
    CP = wfc_pad.shape[1]
    full = lambda shape: pl.BlockSpec(shape, lambda i: (0, 0))
    return pl.pallas_call(
        _semantic_fc_kernel,
        grid=(n_pad // tile,),
        in_specs=[
            pl.BlockSpec((P, tile, D), lambda i: (0, i, 0)),
            full((D, A)), full((1, A)), full((1, A)),
            full((D, CP)), full((1, CP)),
        ],
        out_specs=pl.BlockSpec((tile, CP), lambda i: (i, 0)),
        out_shape=jax.ShapeDtypeStruct((n_pad, CP), jnp.float32),
        compiler_params=pltpu.CompilerParams(
            dimension_semantics=("parallel",)),
    )(x_pnd, w_omega, b_omega, u_row, wfc_pad, bfc_pad)


# -----------------------------------------------------------------------------
# HeteGAT_multi.forward
# -----------------------------------------------------------------------------
def hetegat_multi_forward(inputs_list, bias_mat_list, params, n_heads, *,
                          masks=None, q_tile=512, k_tile=2048, sem_tile=2048):
    heads = n_heads[0]
    P = len(inputs_list)
    N = inputs_list[0].shape[-1]
    H = params["attn_heads"][0]["w1"].shape[0]

    # Precomputed adjacency masks / tile flags (hoist out of the forward path by
    # calling prepare_attention_masks once and passing the result in).
    if masks is None:
        masks = prepare_attention_masks(bias_mat_list, q_tile=q_tile, k_tile=k_tile)
    tq, tk, n_pad = masks["tq"], masks["tk"], masks["n_pad"]

    sf_list, f1t_list, f2_list = [], [], []
    for x, p in zip(inputs_list, params["attn_heads"]):
        F = x.shape[1]
        x_fn = jnp.pad(x[0], ((0, 0), (0, n_pad - N)))                 # [F, n_pad]
        sf, f1, f2 = attn_head_projection(
            x_fn, p["w1"], p["b1"],
            jnp.reshape(p["a1"], (H, 1)), jnp.reshape(p["bf1"], (1, 1)),
            jnp.reshape(p["a2"], (H, 1)), jnp.reshape(p["bf2"], (1, 1)),
            tile=_proj_tile(n_pad, F))
        sf_list.append(sf)                                             # [H, n_pad]
        f1t_list.append(jnp.transpose(f1))                             # [n_pad, 1] (neighbor term)
        f2_list.append(f2)                                             # [1, n_pad] (query term)

    sf_all = jnp.stack(sf_list)                                        # [P, H, n_pad]
    f1t_all = jnp.stack(f1t_list)                                      # [P, n_pad, 1]
    f2_all = jnp.stack(f2_list)                                        # [P, 1, n_pad]

    ret_all = flash_gat_heads(masks["flags"], sf_all, f1t_all, f2_all,
                              masks["mask_t"], tq=tq, tk=tk)[:, :, :N]  # [P, H, N]

    # Replicate the PyTorch head-concat + squeeze().reshape(N, 1, -1) verbatim:
    # all n_heads[0] heads reuse the same module (identical outputs -> tile),
    # and the reshape is a raw row-major reinterpretation of [H*heads, N].
    embed_list = []
    for pi in range(P):
        h1 = jnp.tile(ret_all[pi], (heads, 1))                         # [H*heads, N]
        embed_list.append(jnp.reshape(h1, (N, 1, -1)))                 # [N, 1, 64]
    multi_embed = jnp.concatenate(embed_list, axis=1)                  # [N, P, 64]
    x_pnd = jnp.transpose(multi_embed, (1, 0, 2))                      # [P, N, 64]

    # Semantic attention + fc (fc channel dim padded to 128 -> lane-dense stores).
    A = params["w_omega"].shape[1]
    C = params["w_fc"].shape[1]
    CP = max(128, _round_up(C, 128))
    n_pad_s = _round_up(N, 128)
    t_sem = _pick_tile(n_pad_s, sem_tile)

    x_pnd_p = jnp.pad(x_pnd, ((0, 0), (0, n_pad_s - N), (0, 0)))
    wfc_pad = jnp.pad(params["w_fc"], ((0, 0), (0, CP - C)))
    bfc_pad = jnp.pad(params["b_fc"], ((0, 0), (0, CP - C)))
    u_row = jnp.reshape(params["u_omega"], (1, A))
    b_om = jnp.reshape(params["b_omega"], (1, A))

    out_pad = semantic_att_fc(x_pnd_p, params["w_omega"], b_om, u_row,
                              wfc_pad, bfc_pad, tile=t_sem)
    # torch computes fc n_heads[-1] times on the same final_embed and returns out[0].
    return out_pad[:N, :C]


# -----------------------------------------------------------------------------
# Pure-jnp reference mirroring the PyTorch forward (for validation only).
# -----------------------------------------------------------------------------
def _reference_forward(inputs_list, bias_mat_list, params, n_heads):
    embed_list = []
    for x, bias_mat, p in zip(inputs_list, bias_mat_list, params["attn_heads"]):
        xf = x[0]                                                      # [F, N]
        seq_fts = p["w1"] @ xf + p["b1"]                               # [H, N]
        f1 = p["a1"] @ seq_fts + p["bf1"]                              # [1, N]
        f2 = jnp.transpose(p["a2"] @ seq_fts + p["bf2"])               # [N, 1]
        logits = _leaky_relu(f2 + f1) + bias_mat
        coefs = jax.nn.softmax(logits, axis=-1)
        ret = _elu(jnp.transpose(coefs @ jnp.transpose(seq_fts)))      # [H, N]
        h1 = jnp.tile(ret, (n_heads[0], 1))
        embed_list.append(jnp.reshape(h1, (xf.shape[1], 1, -1)))
    multi_embed = jnp.concatenate(embed_list, axis=1)                  # [N, P, D]
    v = jnp.tanh(multi_embed @ params["w_omega"] + params["b_omega"])  # [N, P, A]
    vu = jnp.squeeze(v @ params["u_omega"], -1)                        # [N, P]
    alphas = jax.nn.softmax(vu, axis=1)
    final = jnp.sum(multi_embed * alphas[..., None], axis=1)           # [N, D]
    return final @ params["w_fc"] + params["b_fc"]


if __name__ == "__main__":
    # Small, deterministic configuration consistent with the module:
    nb_nodes = 16
    feat_dims = [12, 10]          # per-metapath input feature sizes
    hid_units = [8]
    n_heads = [8, 1]              # 8 * 8 = 64 = SimpleAttLayer input size
    nb_classes = 3
    mp_att_size = 128
    D = hid_units[0] * n_heads[0]

    key = jax.random.PRNGKey(0)
    keys = iter(jax.random.split(key, 64))

    # inputs_list: one [1, F_i, nb_nodes] tensor per metapath (Conv1d NCW layout).
    inputs_list = [jax.random.normal(next(keys), (1, f, nb_nodes), jnp.float32)
                   for f in feat_dims]

    # bias_mat_list: 0 where an edge exists, -1e9 otherwise (with self loops).
    bias_mat_list = []
    for _ in feat_dims:
        adj = (jax.random.uniform(next(keys), (nb_nodes, nb_nodes)) < 0.3)
        adj = jnp.maximum(adj.astype(jnp.float32), jnp.eye(nb_nodes, dtype=jnp.float32))
        bias_mat_list.append(jnp.where(adj > 0, 0.0, -1e9).astype(jnp.float32))

    # Deterministic synthetic parameters (shapes from the module's __init__).
    attn_heads = []
    for f in feat_dims:
        attn_heads.append(dict(
            w1=0.1 * jax.random.normal(next(keys), (hid_units[0], f), jnp.float32),
            b1=0.01 * jax.random.normal(next(keys), (hid_units[0], 1), jnp.float32),
            a1=0.1 * jax.random.normal(next(keys), (1, hid_units[0]), jnp.float32),
            bf1=0.01 * jax.random.normal(next(keys), (1, 1), jnp.float32),
            a2=0.1 * jax.random.normal(next(keys), (1, hid_units[0]), jnp.float32),
            bf2=0.01 * jax.random.normal(next(keys), (1, 1), jnp.float32),
        ))
    params = dict(
        attn_heads=attn_heads,
        w_omega=0.1 * jax.random.normal(next(keys), (D, mp_att_size), jnp.float32),
        b_omega=jnp.zeros((1, mp_att_size), jnp.float32),
        u_omega=0.1 * jax.random.normal(next(keys), (mp_att_size, 1), jnp.float32),
        w_fc=0.1 * jax.random.normal(next(keys), (D, nb_classes), jnp.float32),
        b_fc=0.01 * jax.random.normal(next(keys), (1, nb_classes), jnp.float32),
    )

    # Masks / per-tile flags hoisted out of the forward path (precompute once).
    masks = prepare_attention_masks(bias_mat_list)

    out = hetegat_multi_forward(inputs_list, bias_mat_list, params, n_heads,
                                masks=masks)
    out = jax.block_until_ready(out)
    assert out.shape == (nb_nodes, nb_classes)
    assert bool(jnp.all(jnp.isfinite(out)))

    ref = _reference_forward(inputs_list, bias_mat_list, params, n_heads)
    # Tolerance covers the bf16 PV matmul operands + approx reciprocal (both f32
    # accumulated); observed error is well below this.
    assert bool(jnp.allclose(out, ref, rtol=5e-3, atol=5e-3)), \
        float(jnp.max(jnp.abs(out - ref)))
    print("KERNEL_OK")
</pallas_src>

<mosaic_0001>
module attributes {stable_mosaic.version = 11 : i64} {
  func.func @_proj_kernel(%arg0: i32, %arg1: memref<12x128xf32, #tpu.memory_space<vmem>>, %arg2: memref<8x12xf32, #tpu.memory_space<vmem>>, %arg3: memref<8x1xf32, #tpu.memory_space<vmem>>, %arg4: memref<8x1xf32, #tpu.memory_space<vmem>>, %arg5: memref<1x1xf32, #tpu.memory_space<vmem>>, %arg6: memref<8x1xf32, #tpu.memory_space<vmem>>, %arg7: memref<1x1xf32, #tpu.memory_space<vmem>>, %arg8: memref<8x128xf32, #tpu.memory_space<vmem>>, %arg9: memref<1x128xf32, #tpu.memory_space<vmem>>, %arg10: memref<1x128xf32, #tpu.memory_space<vmem>>) attributes {dimension_semantics = [#tpu.dimension_semantics<parallel>], iteration_bounds = array<i64: 1>, scalar_prefetch = 0 : i64, scratch_operands = 0 : i64, tpu.core_type = #tpu.core_type<tc>, window_params = [{transform_indices = @transform_0, window_bounds = array<i64: 12, 128>}, {pipeline_mode = #tpu.pipeline_mode<synchronous>, transform_indices = @transform_1, window_bounds = array<i64: 8, 12>}, {pipeline_mode = #tpu.pipeline_mode<synchronous>, transform_indices = @transform_2, window_bounds = array<i64: 8, 1>}, {pipeline_mode = #tpu.pipeline_mode<synchronous>, transform_indices = @transform_3, window_bounds = array<i64: 8, 1>}, {pipeline_mode = #tpu.pipeline_mode<synchronous>, transform_indices = @transform_4, window_bounds = array<i64: 1, 1>}, {pipeline_mode = #tpu.pipeline_mode<synchronous>, transform_indices = @transform_5, window_bounds = array<i64: 8, 1>}, {pipeline_mode = #tpu.pipeline_mode<synchronous>, transform_indices = @transform_6, window_bounds = array<i64: 1, 1>}, {transform_indices = @transform_7, window_bounds = array<i64: 8, 128>}, {transform_indices = @transform_8, window_bounds = array<i64: 1, 128>}, {transform_indices = @transform_9, window_bounds = array<i64: 1, 128>}]} {
    %c0 = arith.constant 0 : index
    %c0_0 = arith.constant 0 : index
    %0 = vector.load %arg2[%c0, %c0_0] : memref<8x12xf32, #tpu.memory_space<vmem>>, vector<8x12xf32>
    %c0_1 = arith.constant 0 : index
    %c0_2 = arith.constant 0 : index
    %1 = vector.load %arg1[%c0_1, %c0_2] : memref<12x128xf32, #tpu.memory_space<vmem>>, vector<12x128xf32>
    %cst = arith.constant dense<0.000000e+00> : vector<8x128xf32>
    %2 = tpu.matmul %0, %1, %cst {dimension_numbers = #tpu.dot_dimension_numbers<[1], [0], [0], [1], [0, 0, 1, 1], [], []>} : vector<8x12xf32>, vector<12x128xf32>, vector<8x128xf32> -> vector<8x128xf32>
    %c0_3 = arith.constant 0 : index
    %c0_4 = arith.constant 0 : index
    %3 = vector.load %arg3[%c0_3, %c0_4] : memref<8x1xf32, #tpu.memory_space<vmem>>, vector<8x1xf32>
    %4 = vector.broadcast %3 : vector<8x1xf32> to vector<8x128xf32>
    %5 = arith.addf %2, %4 : vector<8x128xf32>
    %c0_5 = arith.constant 0 : index
    %c0_6 = arith.constant 0 : index
    %6 = vector.load %arg8[%c0_5, %c0_6] : memref<8x128xf32, #tpu.memory_space<vmem>>, vector<8x128xf32>
    tpu.vector_store %arg8[%c0_5, %c0_6], %5 {strides = array<i32>} : memref<8x128xf32, #tpu.memory_space<vmem>>, vector<8x128xf32>,
    %c0_7 = arith.constant 0 : index
    %c0_8 = arith.constant 0 : index
    %7 = vector.load %arg4[%c0_7, %c0_8] : memref<8x1xf32, #tpu.memory_space<vmem>>, vector<8x1xf32>
    %8 = vector.broadcast %7 : vector<8x1xf32> to vector<8x128xf32>
    %9 = arith.mulf %5, %8 : vector<8x128xf32>
    %cst_9 = arith.constant dense<0.000000e+00> : vector<128xf32>
    %10 = vector.multi_reduction <add>, %9, %cst_9 [0] : vector<8x128xf32> to vector<128xf32>
    %11 = vector.shape_cast %10 : vector<128xf32> to vector<1x128xf32>
    %c0_10 = arith.constant 0 : index
    %c0_11 = arith.constant 0 : index
    %12 = vector.load %arg5[%c0_10, %c0_11] : memref<1x1xf32, #tpu.memory_space<vmem>>, vector<1x1xf32>
    %13 = vector.broadcast %12 : vector<1x1xf32> to vector<1x128xf32>
    %14 = arith.addf %11, %13 : vector<1x128xf32>
    %c0_12 = arith.constant 0 : index
    %c0_13 = arith.constant 0 : index
    %15 = vector.load %arg9[%c0_12, %c0_13] : memref<1x128xf32, #tpu.memory_space<vmem>>, vector<1x128xf32>
    tpu.vector_store %arg9[%c0_12, %c0_13], %14 {strides = array<i32>} : memref<1x128xf32, #tpu.memory_space<vmem>>, vector<1x128xf32>,
    %c0_14 = arith.constant 0 : index
    %c0_15 = arith.constant 0 : index
    %16 = vector.load %arg6[%c0_14, %c0_15] : memref<8x1xf32, #tpu.memory_space<vmem>>, vector<8x1xf32>
    %17 = vector.broadcast %16 : vector<8x1xf32> to vector<8x128xf32>
    %18 = arith.mulf %5, %17 : vector<8x128xf32>
    %cst_16 = arith.constant dense<0.000000e+00> : vector<128xf32>
    %19 = vector.multi_reduction <add>, %18, %cst_16 [0] : vector<8x128xf32> to vector<128xf32>
    %20 = vector.shape_cast %19 : vector<128xf32> to vector<1x128xf32>
    %c0_17 = arith.constant 0 : index
    %c0_18 = arith.constant 0 : index
    %21 = vector.load %arg7[%c0_17, %c0_18] : memref<1x1xf32, #tpu.memory_space<vmem>>, vector<1x1xf32>
    %22 = vector.broadcast %21 : vector<1x1xf32> to vector<1x128xf32>
    %23 = arith.addf %20, %22 : vector<1x128xf32>
    %c0_19 = arith.constant 0 : index
    %c0_20 = arith.constant 0 : index
    %24 = vector.load %arg10[%c0_19, %c0_20] : memref<1x128xf32, #tpu.memory_space<vmem>>, vector<1x128xf32>
    tpu.vector_store %arg10[%c0_19, %c0_20], %23 {strides = array<i32>} : memref<1x128xf32, #tpu.memory_space<vmem>>, vector<1x128xf32>,
    return
  }
  func.func @transform_0(%arg0: i32) -> (i32, i32) {
    %c0_i32 = arith.constant 0 : i32
    %c0_i32_0 = arith.constant 0 : i32
    return %c0_i32, %arg0 : i32, i32
  }
  func.func @transform_1(%arg0: i32) -> (i32, i32) {
    %c0_i32 = arith.constant 0 : i32
    %c0_i32_0 = arith.constant 0 : i32
    %c0_i32_1 = arith.constant 0 : i32
    return %c0_i32, %c0_i32_0 : i32, i32
  }
  func.func @transform_2(%arg0: i32) -> (i32, i32) {
    %c0_i32 = arith.constant 0 : i32
    %c0_i32_0 = arith.constant 0 : i32
    %c0_i32_1 = arith.constant 0 : i32
    return %c0_i32, %c0_i32_0 : i32, i32
  }
  func.func @transform_3(%arg0: i32) -> (i32, i32) {
    %c0_i32 = arith.constant 0 : i32
    %c0_i32_0 = arith.constant 0 : i32
    %c0_i32_1 = arith.constant 0 : i32
    return %c0_i32, %c0_i32_0 : i32, i32
  }
  func.func @transform_4(%arg0: i32) -> (i32, i32) {
    %c0_i32 = arith.constant 0 : i32
    %c0_i32_0 = arith.constant 0 : i32
    %c0_i32_1 = arith.constant 0 : i32
    return %c0_i32, %c0_i32_0 : i32, i32
  }
  func.func @transform_5(%arg0: i32) -> (i32, i32) {
    %c0_i32 = arith.constant 0 : i32
    %c0_i32_0 = arith.constant 0 : i32
    %c0_i32_1 = arith.constant 0 : i32
    return %c0_i32, %c0_i32_0 : i32, i32
  }
  func.func @transform_6(%arg0: i32) -> (i32, i32) {
    %c0_i32 = arith.constant 0 : i32
    %c0_i32_0 = arith.constant 0 : i32
    %c0_i32_1 = arith.constant 0 : i32
    return %c0_i32, %c0_i32_0 : i32, i32
  }
  func.func @transform_7(%arg0: i32) -> (i32, i32) {
    %c0_i32 = arith.constant 0 : i32
    %c0_i32_0 = arith.constant 0 : i32
    return %c0_i32, %arg0 : i32, i32
  }
  func.func @transform_8(%arg0: i32) -> (i32, i32) {
    %c0_i32 = arith.constant 0 : i32
    %c0_i32_0 = arith.constant 0 : i32
    return %c0_i32, %arg0 : i32, i32
  }
  func.func @transform_9(%arg0: i32) -> (i32, i32) {
    %c0_i32 = arith.constant 0 : i32
    %c0_i32_0 = arith.constant 0 : i32
    return %c0_i32, %arg0 : i32, i32
  }
}

</mosaic_0001>

<llo_original>
// kernel: tpu_custom_call.1
$region0: #{tpu_custom_call.1}
  #allocation0 [shape = 'u32[]', space=smem, size = 0x4, offset = 0x4, fixed_abs, tag = 'smem constant byte address 0x4 - core index']
  #allocation1 [shape = 'u32[72,128]{1,0:T(1,128)}', space=vmem, size = 0x9000, scoped, tag = 'internal scratch']
  #allocation2 [shape = 'f32[1,1]{1,0:T(1,128)S(1)}', space=vmem, size = 0x200, scoped, tag = 'scoped memory for tpu_custom_call.1']
  #allocation3 [shape = 'f32[1,1]{1,0:T(1,128)S(1)}', space=vmem, size = 0x200, scoped, tag = 'scoped memory for tpu_custom_call.1']
  %s0 = inlined_call_operand.vmem [shape: f32[12,128], index: 0, kind: input, shape index: {}]
  %s1 = inlined_call_operand.vmem [shape: f32[8,12], index: 1, kind: input, shape index: {}]
  %s2 = inlined_call_operand.vmem [shape: f32[8,1], index: 2, kind: input, shape index: {}]
  %s3 = inlined_call_operand.vmem [shape: f32[8,1], index: 3, kind: input, shape index: {}]
  %s4 = inlined_call_operand.<no memory space> [shape: f32[1,1], index: 4, kind: input, shape index: {}]
  %s5 = inlined_call_operand.vmem [shape: f32[8,1], index: 5, kind: input, shape index: {}]
  %s6 = inlined_call_operand.<no memory space> [shape: f32[1,1], index: 6, kind: input, shape index: {}]
  %s7 = inlined_call_operand.hbm [shape: f32[8,128], index: 7, kind: output, shape index: {0}]
  %s8 = inlined_call_operand.hbm [shape: f32[1,128], index: 8, kind: output, shape index: {1}]
  %s9 = inlined_call_operand.hbm [shape: f32[1,128], index: 9, kind: output, shape index: {2}]
  %10 = xla_tuple %s7, %s8, %s9
  %s11 = sld [smem:[#allocation0]]
  $region54: #{tpu_custom_call.1} parent=0
    _
  %s13 = ssub.s32 1, %s11
  %s14 = scalar_select 0, %s13, %s11
  %v15 = vstv %s4
  %16 = vst [vmem:[#allocation2] sm:$0x1] %v15
  %v17 = vstv %s6
  %18 = vst [vmem:[#allocation3] sm:$0x1] %v17
  $region1: #{tpu_custom_call.1} parent=0
    #allocation4 [shape = 'u8[4096]{0}', space=vmem, size = 0x1000, scoped, tag = 'output window, operand 0, single buffered']
    #allocation5 [shape = 's32[1]{0}', space=sflag, size = 0x4, scoped, tag = 'scoped memory for tpu_custom_call.1']
    #allocation6 [shape = 'u8[512]{0}', space=vmem, size = 0x400, scoped, tag = 'output window, operand 1, single buffered']
    #allocation7 [shape = 's32[1]{0}', space=sflag, size = 0x4, scoped, tag = 'scoped memory for tpu_custom_call.1']
    #allocation8 [shape = 'u8[512]{0}', space=vmem, size = 0x400, scoped, tag = 'output window, operand 2, single buffered']
    %19 = vsyncpa [#allocation5], 0
    %20 = vsyncpa [#allocation7], 0
    // Predicated region
    $region2: #{tpu_custom_call.1} parent=1 // pred_check
      _
    $region3: #{tpu_custom_call.1} parent=1 // pred_check_branch
      %22 = sbr.rel (0) target = $region5
    $region4: #{tpu_custom_call.1} parent=1 // pred_region
      _
    $region5: #{tpu_custom_call.1} parent=1 // pred_fallthru
      _
    // Predicated region
    $region6: #{tpu_custom_call.1} parent=1 // pred_check
      _
    $region7: #{tpu_custom_call.1} parent=1 // pred_check_branch
      %24 = sbr.rel (0) target = $region9
    $region8: #{tpu_custom_call.1} parent=1 // pred_region
      _
    $region9: #{tpu_custom_call.1} parent=1 // pred_fallthru
      _
    // Predicated region
    $region10: #{tpu_custom_call.1} parent=1 // pred_check
      _
    $region11: #{tpu_custom_call.1} parent=1 // pred_check_branch
      %26 = sbr.rel (0) target = $region13
    $region12: #{tpu_custom_call.1} parent=1 // pred_region
      _
    $region13: #{tpu_custom_call.1} parent=1 // pred_fallthru
      _
    // Predicated region
    $region14: #{tpu_custom_call.1} parent=1 // pred_check
      _
    $region15: #{tpu_custom_call.1} parent=1 // pred_check_branch
      %28 = sbr.rel (0) target = $region17
    $region16: #{tpu_custom_call.1} parent=1 // pred_region
      _
    $region17: #{tpu_custom_call.1} parent=1 // pred_fallthru
      _
    // Predicated region
    $region18: #{tpu_custom_call.1} parent=1 // pred_check
      _
    $region19: #{tpu_custom_call.1} parent=1 // pred_check_branch
      %30 = sbr.rel (0) target = $region21
    $region20: #{tpu_custom_call.1} parent=1 // pred_region
      _
    $region21: #{tpu_custom_call.1} parent=1 // pred_fallthru
      _
    // Predicated region
    $region22: #{tpu_custom_call.1} parent=1 // pred_check
      _
    $region23: #{tpu_custom_call.1} parent=1 // pred_check_branch
      %32 = sbr.rel (0) target = $region25
    $region24: #{tpu_custom_call.1} parent=1 // pred_region
      _
    $region25: #{tpu_custom_call.1} parent=1 // pred_fallthru
      _
    // Predicated region
    $region26: #{tpu_custom_call.1} parent=1 // pred_check
      _
    $region27: #{tpu_custom_call.1} parent=1 // pred_check_branch
      %34 = sbr.rel (0) target = $region29
    $region28: #{tpu_custom_call.1} parent=1 // pred_region
      _
    $region29: #{tpu_custom_call.1} parent=1 // pred_fallthru
      _
    %v35 = vld [vmem:[%s1] sm:$0xff]
    %v36 = vld [vmem:[%s0] sm:$0xff]
    %v37 = vld [vmem:[%s0 + $0x8] sm:$0xf]
    %v38 = vld [vmem:[%s2] sm:$0xff]
    %40 = vset.pattern.permute.xlu0 0
    %41 = vperm.xlu0 %40, %v38
    %v42 = vpop.permute.xlu0 %41
    %vm44 = vcmask 97280
    %v46 = vsel %vm44, %v35, 0
    %vm48 = vcmask 1043456
    %v50 = vsel %vm48, %v37, 0
    %52 = vmatpush.msra.mxu0 0.0
    %53 = vmatpush.msra.mxu0 0.0
    %54 = vmatpush.msra.mxu0 0.0
    %55 = vmatpush.msra.mxu0 0.0
    %56 = vmatpush.msra.mxu0 0.0
    %57 = vmatpush.msra.mxu0 0.0
    %58 = vmatpush.msra.mxu0 0.0
    %59 = vmatpush.msra.mxu0 0.0
    %60 = vmatpush.msra.mxu0 0.0
    %61 = vmatpush.msra.mxu0 0.0
    %62 = vmatpush.msra.mxu0 0.0
    %63 = vmatpush.msra.mxu0 0.0
    %64 = vmatpush.msra.mxu0 0.0
    %65 = vmatpush.msra.mxu0 0.0
    %66 = vmatpush.msra.mxu0 %v50
    %67 = vmatpush.msra.mxu0 %v36
    %68 = vmatmul.f32.gmra.mxu0 %v46
    %v69 = vpop.f32.mrf.mxu0
    %v70 = vadd.f32 %v42, %v69
    %71 = vdwg.mxu0
    %72 = vst [vmem:[#allocation4] sm:$0xff] %v70
    %v73 = vld [vmem:[%s3] sm:$0xff]
    %75 = vset.pattern.permute.xlu0 0
    %76 = vperm.xlu0 %75, %v73
    %v77 = vpop.permute.xlu0 %76
    %v79 = vmul.f32 %v70, %v77
    %v80 = vrot.slane %v79, 4
    %v81 = vadd.f32 %v79, %v80
    %v82 = vrot.slane %v81, 2
    %v83 = vadd.f32 %v81, %v82
    %v84 = vrot.slane %v83, 1
    %v85 = vadd.f32 %v83, %v84
    %v86 = vld [vmem:[#allocation2] sm:$0x1]
    %88 = vset.pattern.permute.xlu0 0
    %89 = vperm.xlu0 %88, %v86
    %v90 = vpop.permute.xlu0 %89
    %v92 = vperm.slane %v90, 0
    %v93 = vadd.f32 %v85, %v92
    %94 = vst [vmem:[#allocation6] sm:$0x1] %v93
    %v95 = vld [vmem:[%s5] sm:$0xff]
    %97 = vset.pattern.permute.xlu0 0
    %98 = vperm.xlu0 %97, %v95
    %v99 = vpop.permute.xlu0 %98
    %v101 = vmul.f32 %v70, %v99
    %v102 = vrot.slane %v101, 4
    %v103 = vadd.f32 %v101, %v102
    %v104 = vrot.slane %v103, 2
    %v105 = vadd.f32 %v103, %v104
    %v106 = vrot.slane %v105, 1
    %v107 = vadd.f32 %v105, %v106
    %v108 = vld [vmem:[#allocation3] sm:$0x1]
    %110 = vset.pattern.permute.xlu0 0
    %111 = vperm.xlu0 %110, %v108
    %v112 = vpop.permute.xlu0 %111
    %v114 = vperm.slane %v112, 0
    %v115 = vadd.f32 %v107, %v114
    %116 = vst [vmem:[#allocation8] sm:$0x1] %v115
    // Predicated region
    $region30: #{tpu_custom_call.1} parent=1 // pred_check
      _
    $region31: #{tpu_custom_call.1} parent=1 // pred_check_branch
      %118 = sbr.rel (0) target = $region33
    $region32: #{tpu_custom_call.1} parent=1 // pred_region
      %120 = vsyncadd [#allocation5], 0
      %s122 = sshll.u32 [#allocation4], 4
      %s123 = int_to_ptr.vmem [resolvable:$true] %s122
      %s124 = sshll.u32 %s7, 4
      %s125 = int_to_ptr.hbm [resolvable:$true] %s124
      %127 = dma.vmem_to_hbm [thread:$0]  %s123, 128, %s125, [#allocation5]
    $region33: #{tpu_custom_call.1} parent=1 // pred_fallthru
      _
    // Predicated region
    $region34: #{tpu_custom_call.1} parent=1 // pred_check
      _
    $region35: #{tpu_custom_call.1} parent=1 // pred_check_branch
      %129 = sbr.rel (0) target = $region37
    $region36: #{tpu_custom_call.1} parent=1 // pred_region
      %131 = vsyncadd [#allocation7], 0
      %s133 = sshll.u32 [#allocation6], 4
      %s134 = int_to_ptr.vmem [resolvable:$true] %s133
      %s135 = sshll.u32 %s8, 4
      %s136 = int_to_ptr.hbm [resolvable:$true] %s135
      %138 = dma.vmem_to_hbm [thread:$0]  %s134, 16, %s136, [#allocation7]
    $region37: #{tpu_custom_call.1} parent=1 // pred_fallthru
      _
    // Predicated region
    $region38: #{tpu_custom_call.1} parent=1 // pred_check
      _
    $region39: #{tpu_custom_call.1} parent=1 // pred_check_branch
      %140 = sbr.rel (0) target = $region41
    $region40: #{tpu_custom_call.1} parent=1 // pred_region
      %142 = vsyncadd [#allocation7], 0
      %s144 = sshll.u32 [#allocation8], 4
      %s145 = int_to_ptr.vmem [resolvable:$true] %s144
      %s146 = sshll.u32 %s9, 4
      %s147 = int_to_ptr.hbm [resolvable:$true] %s146
      %149 = dma.vmem_to_hbm [thread:$0]  %s145, 16, %s147, [#allocation7]
    $region41: #{tpu_custom_call.1} parent=1 // pred_fallthru
      _
    // Predicated region
    $region42: #{tpu_custom_call.1} parent=1 // pred_check
      _
    $region43: #{tpu_custom_call.1} parent=1 // pred_check_branch
      %151 = sbr.rel (0) target = $region45
    $region44: #{tpu_custom_call.1} parent=1 // pred_region
      %153 = dma.done [#allocation5], 128
    $region45: #{tpu_custom_call.1} parent=1 // pred_fallthru
      _
    // Predicated region
    $region46: #{tpu_custom_call.1} parent=1 // pred_check
      _
    $region47: #{tpu_custom_call.1} parent=1 // pred_check_branch
      %155 = sbr.rel (0) target = $region49
    $region48: #{tpu_custom_call.1} parent=1 // pred_region
      %157 = dma.done [#allocation7], 16
    $region49: #{tpu_custom_call.1} parent=1 // pred_fallthru
      _
    // Predicated region
    $region50: #{tpu_custom_call.1} parent=1 // pred_check
      _
    $region51: #{tpu_custom_call.1} parent=1 // pred_check_branch
      %159 = sbr.rel (0) target = $region53
    $region52: #{tpu_custom_call.1} parent=1 // pred_region
      %161 = dma.done [#allocation7], 16
    $region53: #{tpu_custom_call.1} parent=1 // pred_fallthru
      _
    %162 = vsyncpa [#allocation5], 1
    %163 = vsyncpa [#allocation7], 1

</llo_original>
